<compile_context>
chip_gen: v7x
topology: tpu7x:2x2x1
jax: 0.10.0
libtpu: 0.0.40
codegen_flags: <defaults>
</compile_context>

<pallas_src>
import functools

import jax
import jax.numpy as jnp
import numpy as np
from jax.experimental import pallas as pl
from jax.experimental.pallas import tpu as pltpu

# Standard RPNet / CCPD constants (globals referenced by the PyTorch module).
provNum = 38
alphaNum = 25
adNum = 35

_SEG_OFFSETS = (
    4,
    4 + provNum,
    4 + provNum + alphaNum,
    4 + provNum + alphaNum + adNum,
    4 + provNum + alphaNum + adNum * 2,
    4 + provNum + alphaNum + adNum * 3,
    4 + provNum + alphaNum + adNum * 4,
)
_SEG_LENS = (provNum, alphaNum, adNum, adNum, adNum, adNum, adNum)
NUM_SEGS = len(_SEG_OFFSETS)                    # 7
SEG_PAD = 128                                   # lane-dense MXU output width
OUT_DIM = 4 + provNum + alphaNum + adNum * 5    # 242
TGT_DIM = 11
DEFAULT_TILE_N = 2048

_NEG_BIG = np.float32(-1e30)


def _round_up(x, m):
    return ((x + m - 1) // m) * m


def _segment_indicator():
    """Constant 0/1 [242, 128] matrix: column j marks the lanes of segment j."""
    ind = np.zeros((OUT_DIM, SEG_PAD), np.float32)
    for j, (off, ln) in enumerate(zip(_SEG_OFFSETS, _SEG_LENS)):
        ind[off:off + ln, j] = 1.0
    return jnp.asarray(ind)


def _scatter_matrix():
    """Constant 0/1 [11, 242]: row 4+j broadcasts target col 4+j to segment j's lanes."""
    sc = np.zeros((TGT_DIM, OUT_DIM), np.float32)
    for j, (off, ln) in enumerate(zip(_SEG_OFFSETS, _SEG_LENS)):
        sc[4 + j, off:off + ln] = 1.0
    return jnp.asarray(sc)


def _lane_constants():
    """[8, 242] packed lane constants (all hoisted out of the kernel):
       row 0: per-lane local class index within its segment (-1 off-segment)
       row 1: 1.0 on logit lanes, 0.0 on bbox lanes
       row 2: fused L1 weights (0.4, 0.4, 0.1, 0.1) on lanes 0..3
       row 3: 1.0 on MXU-output pad columns >= NUM_SEGS (log fixup), in lanes 0..127
    """
    lc = np.zeros((8, OUT_DIM), np.float32)
    lc[0, :] = -1.0
    for off, ln in zip(_SEG_OFFSETS, _SEG_LENS):
        lc[0, off:off + ln] = np.arange(ln, dtype=np.float32)
        lc[1, off:off + ln] = 1.0
    lc[2, 0:4] = (0.4, 0.4, 0.1, 0.1)
    lc[3, NUM_SEGS:SEG_PAD] = 1.0
    return jnp.asarray(lc)


def _rpnet_loss_kernel(out_ref, tgt_ref, seg_ref, scat_ref, lane_ref,
                       loss_ref, acc_ref, *, n_total, tile_n, tiles_per_split):
    k = pl.program_id(1)                      # reduction (tile) axis
    last = pl.num_programs(1) - 1

    @pl.when(k == 0)
    def _init():
        acc_ref[...] = jnp.zeros_like(acc_ref)

    x = out_ref[...].astype(jnp.float32)      # [tile_n, 242]
    t = tgt_ref[...].astype(jnp.float32)      # [tile_n, 11]

    local_col = lane_ref[0:1, :]              # [1, 242]
    logit_mask = lane_ref[1:2, :]             # [1, 242]
    l1_w = lane_ref[2:3, 0:4]                 # [1, 4]
    pad_fix = lane_ref[3:4, 0:SEG_PAD]        # [1, 128]

    # ---- single row-wide softmax prep: 1 select + 1 XLU max + 1 sub + 1 exp ----
    # TODO(synk): a single global row-max loses precision if one segment's logits
    # trail another's by >~88 in f32 (exp-sum underflow); fine for trained logits.
    x_logit = jnp.where(logit_mask > 0.5, x, _NEG_BIG)
    row_max = jnp.max(x_logit, axis=-1, keepdims=True)             # [tile_n, 1]
    e = jnp.exp(x_logit - row_max)                                 # bbox lanes -> 0

    # All 7 per-segment exp-sums in one MXU matmul against the 0/1 indicator.
    exp_sums = jnp.dot(e, seg_ref[...], preferred_element_type=jnp.float32)
    log_sum = jnp.sum(jnp.log(exp_sums + pad_fix), axis=-1, keepdims=True)

    # Target-logit gather: one small MXU matmul broadcasts each segment's class id
    # to its lanes, then ONE full-width compare (segments are disjoint).
    t_sel = jnp.dot(t, scat_ref[...], preferred_element_type=jnp.float32)
    tgt_match = jnp.abs(t_sel - local_col) < 0.5                   # tolerant compare
    tgt_logit = jnp.sum(jnp.where(tgt_match, x, 0.0), axis=-1, keepdims=True)

    ce_rows = np.float32(NUM_SEGS) * row_max + log_sum - tgt_logit  # [tile_n, 1]

    # Fused weighted L1 on lanes 0..3: 0.4*(|dx|+|dy|) + 0.1*(|dw|+|dh|) per row.
    l1_rows = jnp.sum(l1_w * jnp.abs(x[:, 0:4] - t[:, 0:4]), axis=-1, keepdims=True)

    per_row = l1_rows + ce_rows

    # Ragged last tile: mask rows past N (OOB block rows contain garbage).
    if n_total % tile_n != 0:
        tile_idx = pl.program_id(0) * tiles_per_split + k
        row_ids = tile_idx * tile_n + jax.lax.broadcasted_iota(
            jnp.int32, (tile_n, 1), 0)
        per_row = jnp.where(row_ids < n_total, per_row, 0.0)

    acc_ref[...] = acc_ref[...] + jnp.sum(per_row)

    @pl.when(k == last)
    def _finalize():
        val = acc_ref[...] * np.float32(1.0 / n_total)             # (1, 1)
        loss_ref[...] = jnp.broadcast_to(val.reshape(1, 1, 1), loss_ref.shape)


def rpnet_loss(outputs, targets, *, tile_n=DEFAULT_TILE_N):
    """outputs: [N, 242] float, targets: [N, 11] float (cols 4..10 = class ids)."""
    n, c = outputs.shape
    assert c == OUT_DIM
    assert targets.shape == (n, TGT_DIM)

    tile_n = min(int(tile_n), _round_up(n, 8))
    tile_n = max(8, _round_up(tile_n, 8))
    n_tiles = -(-n // tile_n)
    # Leading "parallel" axis: 2-way split (both TensorCores on v7x) when the
    # tile count divides evenly; otherwise a single split (still correct).
    num_splits = 2 if (n_tiles >= 2 and n_tiles % 2 == 0) else 1
    tiles_per_split = n_tiles // num_splits

    kernel = functools.partial(_rpnet_loss_kernel, n_total=n, tile_n=tile_n,
                               tiles_per_split=tiles_per_split)
    row_map = lambda i, k: (i * tiles_per_split + k, 0)
    const_map = lambda i, k: (0, 0)

    partials = pl.pallas_call(
        kernel,
        out_shape=jax.ShapeDtypeStruct((num_splits, 8, 128), jnp.float32),
        grid=(num_splits, tiles_per_split),
        in_specs=[
            pl.BlockSpec((tile_n, OUT_DIM), row_map),
            pl.BlockSpec((tile_n, TGT_DIM), row_map),
            pl.BlockSpec((OUT_DIM, SEG_PAD), const_map),   # resident constants
            pl.BlockSpec((TGT_DIM, OUT_DIM), const_map),
            pl.BlockSpec((8, OUT_DIM), const_map),
        ],
        out_specs=pl.BlockSpec((1, 8, 128), lambda i, k: (i, 0, 0)),
        scratch_shapes=[pltpu.VMEM((1, 1), jnp.float32)],
        compiler_params=pltpu.CompilerParams(
            dimension_semantics=("parallel", "arbitrary"),
            vmem_limit_bytes=48 * 1024 * 1024),
    )(outputs, targets, _segment_indicator(), _scatter_matrix(), _lane_constants())
    # Each split's scalar is broadcast across a lane-dense (8,128) tile; sum splits.
    return jnp.sum(partials[:, 0, 0])


def _reference(outputs, targets):
    """Pure-JAX reference mirroring the PyTorch module."""
    loss_xy = jnp.mean(jnp.abs(outputs[:, 0:2] - targets[:, 0:2]))
    loss_wh = jnp.mean(jnp.abs(outputs[:, 2:4] - targets[:, 2:4]))
    total = 0.8 * loss_xy + 0.2 * loss_wh
    for i, (off, seg_len) in enumerate(zip(_SEG_OFFSETS, _SEG_LENS)):
        logits = outputs[:, off:off + seg_len]
        cls = targets[:, 4 + i].astype(jnp.int32)
        logp = jax.nn.log_softmax(logits, axis=-1)
        total = total + jnp.mean(-jnp.take_along_axis(logp, cls[:, None], axis=1))
    return total


def _make_inputs(n, key):
    k1, k2, k3 = jax.random.split(key, 3)
    cls_max = jnp.array([provNum, alphaNum, adNum, adNum, adNum, adNum, adNum],
                        dtype=jnp.int32)
    outs = jax.random.normal(k1, (n, OUT_DIM), dtype=jnp.float32)
    bbox = jax.random.uniform(k2, (n, 4), dtype=jnp.float32)
    cls = jax.random.randint(k3, (n, NUM_SEGS), 0, 10000) % cls_max
    tgts = jnp.concatenate([bbox, cls.astype(jnp.float32)], axis=1)  # [n, 11]
    return outs, tgts


if __name__ == "__main__":
    # N=20: default single-tile path and a ragged 3-tile path (masking exercised).
    out20, tgt20 = _make_inputs(20, jax.random.PRNGKey(0))
    ref20 = jax.block_until_ready(_reference(out20, tgt20))
    loss_default = jax.block_until_ready(rpnet_loss(out20, tgt20))
    loss_tiled = jax.block_until_ready(rpnet_loss(out20, tgt20, tile_n=8))
    assert jnp.allclose(loss_default, ref20, rtol=3e-3, atol=1e-3), (loss_default, ref20)
    assert jnp.allclose(loss_tiled, ref20, rtol=3e-3, atol=1e-3), (loss_tiled, ref20)

    # N=32, tile_n=8: even tile count -> exercises the 2-way parallel grid axis.
    out32, tgt32 = _make_inputs(32, jax.random.PRNGKey(1))
    ref32 = jax.block_until_ready(_reference(out32, tgt32))
    loss_split = jax.block_until_ready(rpnet_loss(out32, tgt32, tile_n=8))
    assert jnp.allclose(loss_split, ref32, rtol=3e-3, atol=1e-3), (loss_split, ref32)

    print("KERNEL_OK")
</pallas_src>

<mosaic_0001>
module attributes {stable_mosaic.version = 11 : i64} {
  func.func @_rpnet_loss_kernel(%arg0: i32, %arg1: i32, %arg2: memref<24x242xf32, #tpu.memory_space<vmem>>, %arg3: memref<24x11xf32, #tpu.memory_space<vmem>>, %arg4: memref<242x128xf32, #tpu.memory_space<vmem>>, %arg5: memref<11x242xf32, #tpu.memory_space<vmem>>, %arg6: memref<8x242xf32, #tpu.memory_space<vmem>>, %arg7: memref<1x8x128xf32, #tpu.memory_space<vmem>>, %arg8: memref<1x1xf32, #tpu.memory_space<vmem>>) attributes {dimension_semantics = [#tpu.dimension_semantics<parallel>, #tpu.dimension_semantics<arbitrary>], iteration_bounds = array<i64: 1, 1>, scalar_prefetch = 0 : i64, scratch_operands = 1 : i64, tpu.core_type = #tpu.core_type<tc>, window_params = [{transform_indices = @transform_0, window_bounds = array<i64: 24, 242>}, {transform_indices = @transform_1, window_bounds = array<i64: 24, 11>}, {pipeline_mode = #tpu.pipeline_mode<synchronous>, transform_indices = @transform_2, window_bounds = array<i64: 242, 128>}, {pipeline_mode = #tpu.pipeline_mode<synchronous>, transform_indices = @transform_3, window_bounds = array<i64: 11, 242>}, {pipeline_mode = #tpu.pipeline_mode<synchronous>, transform_indices = @transform_4, window_bounds = array<i64: 8, 242>}, {transform_indices = @transform_5, window_bounds = array<i64: 1, 8, 128>}]} {
    %c0_i32 = arith.constant 0 : i32
    %0 = arith.cmpi eq, %arg1, %c0_i32 : i32
    %1 = arith.extui %0 : i1 to i32
    %c0_i32_0 = arith.constant 0 : i32
    %2 = arith.cmpi ne, %1, %c0_i32_0 : i32
    scf.if %2 {
      %cst_31 = arith.constant 0.000000e+00 : f32
      %72 = vector.broadcast %cst_31 : f32 to vector<1x1xf32>
      %c0_32 = arith.constant 0 : index
      %c0_33 = arith.constant 0 : index
      %73 = vector.load %arg8[%c0_32, %c0_33] : memref<1x1xf32, #tpu.memory_space<vmem>>, vector<1x1xf32>
      tpu.vector_store %arg8[%c0_32, %c0_33], %72 {strides = array<i32>} : memref<1x1xf32, #tpu.memory_space<vmem>>, vector<1x1xf32>,
    } else {
    }
    %c0 = arith.constant 0 : index
    %c0_1 = arith.constant 0 : index
    %3 = vector.load %arg2[%c0, %c0_1] : memref<24x242xf32, #tpu.memory_space<vmem>>, vector<24x242xf32>
    %c0_2 = arith.constant 0 : index
    %c0_3 = arith.constant 0 : index
    %4 = vector.load %arg3[%c0_2, %c0_3] : memref<24x11xf32, #tpu.memory_space<vmem>>, vector<24x11xf32>
    %c0_4 = arith.constant 0 : index
    %c0_5 = arith.constant 0 : index
    %5 = vector.load %arg6[%c0_4, %c0_5] : memref<8x242xf32, #tpu.memory_space<vmem>>, vector<1x242xf32>
    %c1 = arith.constant 1 : index
    %c0_6 = arith.constant 0 : index
    %6 = vector.load %arg6[%c1, %c0_6] : memref<8x242xf32, #tpu.memory_space<vmem>>, vector<1x242xf32>
    %c2 = arith.constant 2 : index
    %c0_7 = arith.constant 0 : index
    %7 = vector.load %arg6[%c2, %c0_7] : memref<8x242xf32, #tpu.memory_space<vmem>>, vector<1x4xf32>
    %c3 = arith.constant 3 : index
    %c0_8 = arith.constant 0 : index
    %8 = vector.load %arg6[%c3, %c0_8] : memref<8x242xf32, #tpu.memory_space<vmem>>, vector<1x128xf32>
    %cst = arith.constant 5.000000e-01 : f32
    %9 = vector.broadcast %cst : f32 to vector<1x242xf32>
    %10 = arith.cmpf ogt, %6, %9 : vector<1x242xf32>
    %cst_9 = arith.constant -1.000000e+30 : f32
    %11 = vector.shape_cast %10 : vector<1x242xi1> to vector<1x242xi1>
    %12 = vector.broadcast %11 : vector<1x242xi1> to vector<24x242xi1>
    %13 = vector.broadcast %cst_9 : f32 to vector<24x242xf32>
    %14 = arith.select %12, %3, %13 : vector<24x242xi1>, vector<24x242xf32>
    %cst_10 = arith.constant dense<0xFF800000> : vector<24xf32>
    %15 = vector.multi_reduction <maximumf>, %14, %cst_10 [1] : vector<24x242xf32> to vector<24xf32>
    %16 = vector.shape_cast %15 : vector<24xf32> to vector<24x1xf32>
    %17 = vector.broadcast %16 : vector<24x1xf32> to vector<24x242xf32>
    %18 = arith.subf %14, %17 : vector<24x242xf32>
    %19 = math.exp %18 : vector<24x242xf32>
    %c0_11 = arith.constant 0 : index
    %c0_12 = arith.constant 0 : index
    %20 = vector.load %arg4[%c0_11, %c0_12] : memref<242x128xf32, #tpu.memory_space<vmem>>, vector<242x128xf32>
    %cst_13 = arith.constant dense<0.000000e+00> : vector<24x128xf32>
    %21 = tpu.matmul %19, %20, %cst_13 {dimension_numbers = #tpu.dot_dimension_numbers<[1], [0], [0], [1], [0, 0, 1, 1], [], []>} : vector<24x242xf32>, vector<242x128xf32>, vector<24x128xf32> -> vector<24x128xf32>
    %22 = vector.broadcast %8 : vector<1x128xf32> to vector<24x128xf32>
    %23 = arith.addf %21, %22 : vector<24x128xf32>
    %24 = math.log %23 : vector<24x128xf32>
    %cst_14 = arith.constant dense<0.000000e+00> : vector<24xf32>
    %25 = vector.multi_reduction <add>, %24, %cst_14 [1] : vector<24x128xf32> to vector<24xf32>
    %26 = vector.shape_cast %25 : vector<24xf32> to vector<24x1xf32>
    %c0_15 = arith.constant 0 : index
    %c0_16 = arith.constant 0 : index
    %27 = vector.load %arg5[%c0_15, %c0_16] : memref<11x242xf32, #tpu.memory_space<vmem>>, vector<11x242xf32>
    %cst_17 = arith.constant dense<0.000000e+00> : vector<24x242xf32>
    %28 = tpu.matmul %4, %27, %cst_17 {dimension_numbers = #tpu.dot_dimension_numbers<[1], [0], [0], [1], [0, 0, 1, 1], [], []>} : vector<24x11xf32>, vector<11x242xf32>, vector<24x242xf32> -> vector<24x242xf32>
    %29 = vector.broadcast %5 : vector<1x242xf32> to vector<24x242xf32>
    %30 = arith.subf %28, %29 : vector<24x242xf32>
    %31 = math.absf %30 : vector<24x242xf32>
    %cst_18 = arith.constant 5.000000e-01 : f32
    %32 = vector.broadcast %cst_18 : f32 to vector<24x242xf32>
    %33 = arith.cmpf olt, %31, %32 : vector<24x242xf32>
    %cst_19 = arith.constant 0.000000e+00 : f32
    %34 = vector.broadcast %cst_19 : f32 to vector<24x242xf32>
    %35 = arith.select %33, %3, %34 : vector<24x242xi1>, vector<24x242xf32>
    %cst_20 = arith.constant dense<0.000000e+00> : vector<24xf32>
    %36 = vector.multi_reduction <add>, %35, %cst_20 [1] : vector<24x242xf32> to vector<24xf32>
    %37 = vector.shape_cast %36 : vector<24xf32> to vector<24x1xf32>
    %cst_21 = arith.constant 7.000000e+00 : f32
    %38 = vector.broadcast %cst_21 : f32 to vector<24x1xf32>
    %39 = arith.mulf %38, %16 : vector<24x1xf32>
    %40 = arith.addf %39, %26 : vector<24x1xf32>
    %41 = arith.subf %40, %37 : vector<24x1xf32>
    %42 = vector.extract_strided_slice %3 {offsets = [0, 0], sizes = [24, 4], strides = [1, 1]} : vector<24x242xf32> to vector<24x4xf32>
    %43 = vector.extract_strided_slice %4 {offsets = [0, 0], sizes = [24, 4], strides = [1, 1]} : vector<24x11xf32> to vector<24x4xf32>
    %44 = arith.subf %42, %43 : vector<24x4xf32>
    %45 = math.absf %44 : vector<24x4xf32>
    %46 = vector.broadcast %7 : vector<1x4xf32> to vector<24x4xf32>
    %47 = arith.mulf %46, %45 : vector<24x4xf32>
    %cst_22 = arith.constant dense<0.000000e+00> : vector<24xf32>
    %48 = vector.multi_reduction <add>, %47, %cst_22 [1] : vector<24x4xf32> to vector<24xf32>
    %49 = vector.shape_cast %48 : vector<24xf32> to vector<24x1xf32>
    %50 = arith.addf %49, %41 : vector<24x1xf32>
    %c1_i32 = arith.constant 1 : i32
    %51 = arith.muli %arg0, %c1_i32 : i32
    %52 = arith.addi %51, %arg1 : i32
    %c24_i32 = arith.constant 24 : i32
    %53 = arith.muli %52, %c24_i32 : i32
    %54 = tpu.iota {dimensions = array<i32: 0>} : vector<24x1xi32>
    %55 = vector.broadcast %53 : i32 to vector<24x1xi32>
    %56 = arith.addi %55, %54 : vector<24x1xi32>
    %c20_i32 = arith.constant 20 : i32
    %57 = vector.broadcast %c20_i32 : i32 to vector<24x1xi32>
    %58 = arith.cmpi slt, %56, %57 : vector<24x1xi32>
    %cst_23 = arith.constant 0.000000e+00 : f32
    %59 = vector.broadcast %cst_23 : f32 to vector<24x1xf32>
    %60 = arith.select %58, %50, %59 : vector<24x1xi1>, vector<24x1xf32>
    %c0_24 = arith.constant 0 : index
    %c0_25 = arith.constant 0 : index
    %61 = vector.load %arg8[%c0_24, %c0_25] : memref<1x1xf32, #tpu.memory_space<vmem>>, vector<1x1xf32>
    %62 = vector.shape_cast %60 : vector<24x1xf32> to vector<1x24x1xf32>
    %cst_26 = arith.constant dense<0.000000e+00> : vector<1xf32>
    %63 = vector.multi_reduction <add>, %62, %cst_26 [1, 2] : vector<1x24x1xf32> to vector<1xf32>
    %64 = vector.shape_cast %63 : vector<1xf32> to vector<1x1x1xf32>
    %65 = vector.extract %64[0, 0, 0] : f32 from vector<1x1x1xf32>
    %66 = vector.broadcast %65 : f32 to vector<1x1xf32>
    %67 = arith.addf %61, %66 : vector<1x1xf32>
    %c0_27 = arith.constant 0 : index
    %c0_28 = arith.constant 0 : index
    %68 = vector.load %arg8[%c0_27, %c0_28] : memref<1x1xf32, #tpu.memory_space<vmem>>, vector<1x1xf32>
    tpu.vector_store %arg8[%c0_27, %c0_28], %67 {strides = array<i32>} : memref<1x1xf32, #tpu.memory_space<vmem>>, vector<1x1xf32>,
    %c0_i32_29 = arith.constant 0 : i32
    %69 = arith.cmpi eq, %arg1, %c0_i32_29 : i32
    %70 = arith.extui %69 : i1 to i32
    %c0_i32_30 = arith.constant 0 : i32
    %71 = arith.cmpi ne, %70, %c0_i32_30 : i32
    scf.if %71 {
      %c0_31 = arith.constant 0 : index
      %c0_32 = arith.constant 0 : index
      %72 = vector.load %arg8[%c0_31, %c0_32] : memref<1x1xf32, #tpu.memory_space<vmem>>, vector<1x1xf32>
      %cst_33 = arith.constant 5.000000e-02 : f32
      %73 = vector.broadcast %cst_33 : f32 to vector<1x1xf32>
      %74 = arith.mulf %72, %73 : vector<1x1xf32>
      %75 = vector.shape_cast %74 : vector<1x1xf32> to vector<1x1x1xf32>
      %76 = vector.shape_cast %75 : vector<1x1x1xf32> to vector<1x1x1xf32>
      %77 = vector.broadcast %76 : vector<1x1x1xf32> to vector<1x8x128xf32>
      %c0_34 = arith.constant 0 : index
      %c0_35 = arith.constant 0 : index
      %c0_36 = arith.constant 0 : index
      %78 = vector.load %arg7[%c0_34, %c0_35, %c0_36] : memref<1x8x128xf32, #tpu.memory_space<vmem>>, vector<1x8x128xf32>
      tpu.vector_store %arg7[%c0_34, %c0_35, %c0_36], %77 {strides = array<i32>} : memref<1x8x128xf32, #tpu.memory_space<vmem>>, vector<1x8x128xf32>,
    } else {
    }
    return
  }
  func.func @transform_0(%arg0: i32, %arg1: i32) -> (i32, i32) {
    %c1_i32 = arith.constant 1 : i32
    %0 = arith.muli %arg0, %c1_i32 : i32
    %1 = arith.addi %0, %arg1 : i32
    %c0_i32 = arith.constant 0 : i32
    %c0_i32_0 = arith.constant 0 : i32
    return %1, %c0_i32 : i32, i32
  }
  func.func @transform_1(%arg0: i32, %arg1: i32) -> (i32, i32) {
    %c1_i32 = arith.constant 1 : i32
    %0 = arith.muli %arg0, %c1_i32 : i32
    %1 = arith.addi %0, %arg1 : i32
    %c0_i32 = arith.constant 0 : i32
    %c0_i32_0 = arith.constant 0 : i32
    return %1, %c0_i32 : i32, i32
  }
  func.func @transform_2(%arg0: i32, %arg1: i32) -> (i32, i32) {
    %c0_i32 = arith.constant 0 : i32
    %c0_i32_0 = arith.constant 0 : i32
    %c0_i32_1 = arith.constant 0 : i32
    return %c0_i32, %c0_i32_0 : i32, i32
  }
  func.func @transform_3(%arg0: i32, %arg1: i32) -> (i32, i32) {
    %c0_i32 = arith.constant 0 : i32
    %c0_i32_0 = arith.constant 0 : i32
    %c0_i32_1 = arith.constant 0 : i32
    return %c0_i32, %c0_i32_0 : i32, i32
  }
  func.func @transform_4(%arg0: i32, %arg1: i32) -> (i32, i32) {
    %c0_i32 = arith.constant 0 : i32
    %c0_i32_0 = arith.constant 0 : i32
    %c0_i32_1 = arith.constant 0 : i32
    return %c0_i32, %c0_i32_0 : i32, i32
  }
  func.func @transform_5(%arg0: i32, %arg1: i32) -> (i32, i32, i32) {
    %c0_i32 = arith.constant 0 : i32
    %c0_i32_0 = arith.constant 0 : i32
    %c0_i32_1 = arith.constant 0 : i32
    return %arg0, %c0_i32, %c0_i32_0 : i32, i32, i32
  }
}

</mosaic_0001>

<llo_original>
// kernel: tpu_custom_call.1
$region0: #{tpu_custom_call.1}
  #allocation0 [shape = 'u32[]', space=smem, size = 0x4, offset = 0x4, fixed_abs, tag = 'smem constant byte address 0x4 - core index']
  #allocation1 [shape = 'u32[144,128]{1,0:T(1,128)}', space=vmem, size = 0x12000, scoped, tag = 'internal scratch']
  #allocation2 [shape = 'f32[1,1]{1,0:T(1,128)}', space=vmem, size = 0x200, scoped, tag = 'scratch operand']
  %s0 = inlined_call_operand.hbm [shape: f32[20,242], index: 0, kind: input, shape index: {}]
  %s1 = inlined_call_operand.vmem [shape: f32[20,11], index: 1, kind: input, shape index: {}]
  %s2 = inlined_call_operand.hbm [shape: f32[242,128], index: 2, kind: input, shape index: {}]
  %s3 = inlined_call_operand.vmem [shape: f32[11,242], index: 3, kind: input, shape index: {}]
  %s4 = inlined_call_operand.vmem [shape: f32[8,242], index: 4, kind: input, shape index: {}]
  %s5 = inlined_call_operand.hbm [shape: f32[1,8,128], index: 5, kind: output, shape index: {}]
  %s6 = sld [smem:[#allocation0]]
  $region46: #{tpu_custom_call.1} parent=0
    _
  %s8 = ssub.s32 1, %s6
  %s9 = scalar_select 0, %s8, %s6
  $region1: #{tpu_custom_call.1} parent=0
    #allocation3 [shape = 'u8[24576]{0}', space=vmem, size = 0x6000, scoped, tag = 'input window, operand 0, single buffered']
    #allocation4 [shape = 's32[1]{0}', space=sflag, size = 0x4, scoped, tag = 'scoped memory for tpu_custom_call.1']
    #allocation5 [shape = 's32[1]{0}', space=sflag, size = 0x4, scoped, tag = 'scoped memory for tpu_custom_call.1']
    #allocation6 [shape = 'u8[126976]{0}', space=vmem, size = 0x1f000, scoped, tag = 'input window, operand 2, single buffered']
    #allocation7 [shape = 's32[1]{0}', space=sflag, size = 0x4, scoped, tag = 'scoped memory for tpu_custom_call.1']
    #allocation8 [shape = 'u8[4096]{0}', space=vmem, size = 0x1000, scoped, tag = 'output window, operand 0, single buffered']
    %10 = vsyncpa [#allocation4], 0
    %11 = vsyncpa [#allocation7], 0
    %12 = vsyncpa [#allocation5], 0
    // Predicated region
    $region2: #{tpu_custom_call.1} parent=1 // pred_check
      _
    $region3: #{tpu_custom_call.1} parent=1 // pred_check_branch
      %14 = sbr.rel (0) target = $region5
    $region4: #{tpu_custom_call.1} parent=1 // pred_region
      %s15 = sadd.s32 0, 0
      %s16 = smul.u32 3, %s15
      %s18 = ssub.s32 768, 768
      %19 = vsyncadd [#allocation4], %s18
      %s20 = smul.addr %s16, 2
      %s21 = smul.addr %s20, 128
      %s22 = scalar_lea.hbm %s0, %s21
      %s23 = sshll.u32 [#allocation3], 4
      %s24 = int_to_ptr.vmem [resolvable:$true] %s23
      %29 = dma.hbm_to_vmem [thread:$0]  %s22, 768, %s24, [#allocation4], 256, 256, 16
    $region5: #{tpu_custom_call.1} parent=1 // pred_fallthru
      _
    // Predicated region
    $region6: #{tpu_custom_call.1} parent=1 // pred_check
      _
    $region7: #{tpu_custom_call.1} parent=1 // pred_check_branch
      %31 = sbr.rel (0) target = $region9
    $region8: #{tpu_custom_call.1} parent=1 // pred_region
      %s32 = sadd.s32 0, 0
      %s33 = smul.u32 3, %s32
      %p34 = scmp.lt.s32.totalorder %s33, 2
      %s35 = scalar_select %p34, %s33, 2
      %s36 = smul.addr %s35, 8
      %s37 = scalar_lea.vmem %s1, %s36
      %s38 = sadd.s32 0, 0
      %s39 = smul.u32 3, %s38
    $region9: #{tpu_custom_call.1} parent=1 // pred_fallthru
      _
    // Predicated region
    $region10: #{tpu_custom_call.1} parent=1 // pred_check
      _
    $region11: #{tpu_custom_call.1} parent=1 // pred_check_branch
      %41 = sbr.rel (0) target = $region13
    $region12: #{tpu_custom_call.1} parent=1 // pred_region
      %s43 = ssub.s32 3968, 3968
      %44 = vsyncadd [#allocation7], %s43
      %s45 = sshll.u32 [#allocation6], 4
      %s46 = int_to_ptr.vmem [resolvable:$true] %s45
      %51 = dma.hbm_to_vmem [thread:$0]  %s2, 3968, %s46, [#allocation7], 128, 128, 8
    $region13: #{tpu_custom_call.1} parent=1 // pred_fallthru
      _
    // Predicated region
    $region14: #{tpu_custom_call.1} parent=1 // pred_check
      _
    $region15: #{tpu_custom_call.1} parent=1 // pred_check_branch
      %53 = sbr.rel (0) target = $region17
    $region16: #{tpu_custom_call.1} parent=1 // pred_region
      _
    $region17: #{tpu_custom_call.1} parent=1 // pred_fallthru
      _
    // Predicated region
    $region18: #{tpu_custom_call.1} parent=1 // pred_check
      _
    $region19: #{tpu_custom_call.1} parent=1 // pred_check_branch
      %55 = sbr.rel (0) target = $region21
    $region20: #{tpu_custom_call.1} parent=1 // pred_region
      _
    $region21: #{tpu_custom_call.1} parent=1 // pred_fallthru
      _
    // Predicated region
    $region22: #{tpu_custom_call.1} parent=1 // pred_check
      _
    $region23: #{tpu_custom_call.1} parent=1 // pred_check_branch
      %57 = sbr.rel (0) target = $region25
    $region24: #{tpu_custom_call.1} parent=1 // pred_region
      %58 = dma.done [#allocation4], 768
    $region25: #{tpu_custom_call.1} parent=1 // pred_fallthru
      _
    // Predicated region
    $region26: #{tpu_custom_call.1} parent=1 // pred_check
      _
    $region27: #{tpu_custom_call.1} parent=1 // pred_check_branch
      %60 = sbr.rel (0) target = $region29
    $region28: #{tpu_custom_call.1} parent=1 // pred_region
      %61 = dma.done [#allocation7], 3968
    $region29: #{tpu_custom_call.1} parent=1 // pred_fallthru
      _
    %s62 = sadd.s32 0, 0
    %s63 = smul.u32 3, %s62
    %p64 = scmp.lt.s32.totalorder %s63, 2
    %s65 = scalar_select %p64, %s63, 2
    %s66 = smul.addr %s65, 8
    %s67 = scalar_lea.vmem %s1, %s66
    %s68 = sadd.s32 0, 0
    %s69 = smul.u32 3, %s68
    %s70 = sadd.s32 0, 0
    %s71 = smul.u32 3, %s70
    %p72 = scmp.lt.s32.totalorder %s71, 2
    %s73 = scalar_select %p72, %s71, 2
    %s74 = smul.addr %s73, 8
    %s75 = scalar_lea.vmem %s1, %s74
    %s76 = sadd.s32 0, 0
    %s77 = smul.u32 3, %s76
    %p78 = scmp.eq.s32.totalorder 0, 0
    // Predicated region
    $region30: #{tpu_custom_call.1} parent=1 // pred_check
      %p79 = pneg %p78
    $region31: #{tpu_custom_call.1} parent=1 // pred_check_branch
      %81 = sbr.rel (%p79) target = $region33
    $region32: #{tpu_custom_call.1} parent=1 // pred_region
      %vm82 = vcmask 0
      %83 = vst.msk [vmem:[#allocation2] sm:$0x1] %vm82, 0.0
    $region33: #{tpu_custom_call.1} parent=1 // pred_fallthru
      _
    %v84 = vld [vmem:[#allocation3] sm:$0xff]
    %v85 = vld [vmem:[#allocation3 + $0x8] sm:$0xff]
    %v86 = vld [vmem:[#allocation3 + $0x10] sm:$0xff]
    %v87 = vld [vmem:[#allocation3 + $0x18] sm:$0xff]
    %v88 = vld [vmem:[#allocation3 + $0x20] sm:$0xff]
    %v89 = vld [vmem:[#allocation3 + $0x28] sm:$0xff]
    %v90 = vld [vmem:[%s75] sm:$0xff]
    %v91 = vld [vmem:[%s75 + $0x8] sm:$0xff]
    %v92 = vld [vmem:[%s75 + $0x10] sm:$0xff]
    %v93 = vld [vmem:[%s4] ss:$8 sm:$0x3]
    %s94 = scalar_lea.vmem %s4, 1
    %v95 = vld [vmem:[%s94] ss:$8 sm:$0x3]
    %v96 = vld [vmem:[%s4 + $0x2] ss:$0 sm:$0xff]
    %v97 = vld [vmem:[%s4 + $0x3] ss:$0 sm:$0xff]
    %vm98 = vcmp.gt.f32.partialorder %v95, 0.5
    %v99 = vsel %vm98, 1, 0
    %v100 = vlaneseq
    %v101 = vshrl.u32 %v100, 7
    %v102 = vsub.s32 0, %v101
    %v103 = vrot.slane %v99, %v102
    %v104 = vlaneseq
    %v105 = vshrl.u32 %v104, 7
    %v106 = vsub.s32 1, %v105
    %v107 = vrot.slane %v99, %v106
    %vm108 = vcmp.eq.s32.totalorder %v103, 1
    %vm109 = vcmp.eq.s32.totalorder %v107, 1
    %v110 = vsel %vm108, %v84, -1e+30
    %v111 = vsel %vm109, %v85, -1e+30
    %v112 = vsel %vm108, %v86, -1e+30
    %v113 = vsel %vm109, %v87, -1e+30
    %v114 = vsel %vm108, %v88, -1e+30
    %v115 = vsel %vm109, %v89, -1e+30
    %vm116 = vcmask 932864
    %v117 = vsel %vm116, %v111, -inf
    %v118 = vmax.f32 %v110, %v117
    %119 = vmax.xlane.f32.xlu0 %v118
    %v120 = vpop.xlane.xlu0 %119
    %v121 = vsel %vm116, %v113, -inf
    %v122 = vmax.f32 %v112, %v121
    %123 = vmax.xlane.f32.xlu0 %v122
    %v124 = vpop.xlane.xlu0 %123
    %v125 = vsel %vm116, %v115, -inf
    %v126 = vmax.f32 %v114, %v125
    %127 = vmax.xlane.f32.xlu0 %v126
    %v128 = vpop.xlane.xlu0 %127
    %v129 = vsub.f32 %v110, %v120
    %v130 = vsub.f32 %v111, %v120
    %v131 = vsub.f32 %v112, %v124
    %v132 = vsub.f32 %v113, %v124
    %v133 = vsub.f32 %v114, %v128
    %v134 = vsub.f32 %v115, %v128
    %v135 = vmul.f32 %v129, 1.442695
    %v136 = vpow.pop %v135
    %v137 = vmul.f32 %v130, 1.442695
    %v138 = vpow.pop %v137
    %v139 = vmul.f32 %v131, 1.442695
    %v140 = vpow.pop %v139
    %v141 = vmul.f32 %v132, 1.442695
    %v142 = vpow.pop %v141
    %v143 = vmul.f32 %v133, 1.442695
    %v144 = vpow.pop %v143
    %v145 = vmul.f32 %v134, 1.442695
    %v146 = vpow.pop %v145
    %v147 = vld [vmem:[#allocation6] sm:$0xff]
    %v148 = vld [vmem:[#allocation6 + $0x8] sm:$0xff]
    %v149 = vld [vmem:[#allocation6 + $0x10] sm:$0xff]
    %v150 = vld [vmem:[#allocation6 + $0x18] sm:$0xff]
    %v151 = vld [vmem:[#allocation6 + $0x20] sm:$0xff]
    %v152 = vld [vmem:[#allocation6 + $0x28] sm:$0xff]
    %v153 = vld [vmem:[#allocation6 + $0x30] sm:$0xff]
    %v154 = vld [vmem:[#allocation6 + $0x38] sm:$0xff]
    %v155 = vld [vmem:[#allocation6 + $0x40] sm:$0xff]
    %v156 = vld [vmem:[#allocation6 + $0x48] sm:$0xff]
    %v157 = vld [vmem:[#allocation6 + $0x50] sm:$0xff]
    %v158 = vld [vmem:[#allocation6 + $0x58] sm:$0xff]
    %v159 = vld [vmem:[#allocation6 + $0x60] sm:$0xff]
    %v160 = vld [vmem:[#allocation6 + $0x68] sm:$0xff]
    %v161 = vld [vmem:[#allocation6 + $0x70] sm:$0xff]
    %v162 = vld [vmem:[#allocation6 + $0x78] sm:$0xff]
    %v163 = vld [vmem:[#allocation6 + $0x80] sm:$0xff]
    %v164 = vld [vmem:[#allocation6 + $0x88] sm:$0xff]
    %v165 = vld [vmem:[#allocation6 + $0x90] sm:$0xff]
    %v166 = vld [vmem:[#allocation6 + $0x98] sm:$0xff]
    %v167 = vld [vmem:[#allocation6 + $0xa0] sm:$0xff]
    %v168 = vld [vmem:[#allocation6 + $0xa8] sm:$0xff]
    %v169 = vld [vmem:[#allocation6 + $0xb0] sm:$0xff]
    %v170 = vld [vmem:[#allocation6 + $0xb8] sm:$0xff]
    %v171 = vld [vmem:[#allocation6 + $0xc0] sm:$0xff]
    %v172 = vld [vmem:[#allocation6 + $0xc8] sm:$0xff]
    %v173 = vld [vmem:[#allocation6 + $0xd0] sm:$0xff]
    %v174 = vld [vmem:[#allocation6 + $0xd8] sm:$0xff]
    %v175 = vld [vmem:[#allocation6 + $0xe0] sm:$0xff]
    %v176 = vld [vmem:[#allocation6 + $0xe8] sm:$0xff]
    %v177 = vld [vmem:[#allocation6 + $0xf0] sm:$0x3]
    %v179 = vsel %vm116, %v138, 0
    %v182 = vsel %vm116, %v142, 0
    %v185 = vsel %vm116, %v146, 0
    %vm187 = vcmask 1041408
    %v189 = vsel %vm187, %v177, 0
    %191 = vmatprep.subr.mxu0 0.0
    %192 = vmatpush1.msra.mxu0 %v147
    %193 = vmatprep.subr.mxu0 0.0
    %194 = vmatpush1.msra.mxu0 %v148
    %195 = vmatprep.subr.mxu0 0.0
    %196 = vmatpush1.msra.mxu0 %v149
    %197 = vmatprep.subr.mxu0 0.0
    %198 = vmatpush1.msra.mxu0 %v150
    %199 = vmatprep.subr.mxu0 0.0
    %200 = vmatpush1.msra.mxu0 %v151
    %201 = vmatprep.subr.mxu0 0.0
    %202 = vmatpush1.msra.mxu0 %v152
    %203 = vmatprep.subr.mxu0 0.0
    %204 = vmatpush1.msra.mxu0 %v153
    %205 = vmatprep.subr.mxu0 0.0
    %206 = vmatpush1.msra.mxu0 %v154
    %207 = vmatprep.subr.mxu0 0.0
    %208 = vmatpush1.msra.mxu0 %v155
    %209 = vmatprep.subr.mxu0 0.0
    %210 = vmatpush1.msra.mxu0 %v156
    %211 = vmatprep.subr.mxu0 0.0
    %212 = vmatpush1.msra.mxu0 %v157
    %213 = vmatprep.subr.mxu0 0.0
    %214 = vmatpush1.msra.mxu0 %v158
    %215 = vmatprep.subr.mxu0 0.0
    %216 = vmatpush1.msra.mxu0 %v159
    %217 = vmatprep.subr.mxu0 0.0
    %218 = vmatpush1.msra.mxu0 %v160
    %219 = vmatprep.subr.mxu0 0.0
    %220 = vmatpush1.msra.mxu0 %v161
    %221 = vmatprep.subr.mxu0 0.0
    %222 = vmatpush1.msra.mxu0 %v162
    %223 = vmatprep.subr.mxu0 0.0
    %224 = vmatpush1.msra.mxu0 %v163
    %225 = vmatprep.subr.mxu0 0.0
    %226 = vmatpush1.msra.mxu0 %v164
    %227 = vmatprep.subr.mxu0 0.0
    %228 = vmatpush1.msra.mxu0 %v165
    %229 = vmatprep.subr.mxu0 0.0
    %230 = vmatpush1.msra.mxu0 %v166
    %231 = vmatprep.subr.mxu0 0.0
    %232 = vmatpush1.msra.mxu0 %v167
    %233 = vmatprep.subr.mxu0 0.0
    %234 = vmatpush1.msra.mxu0 %v168
    %235 = vmatprep.subr.mxu0 0.0
    %236 = vmatpush1.msra.mxu0 %v169
    %237 = vmatprep.subr.mxu0 0.0
    %238 = vmatpush1.msra.mxu0 %v170
    %239 = vmatprep.subr.mxu0 0.0
    %240 = vmatpush1.msra.mxu0 %v171
    %241 = vmatprep.subr.mxu0 0.0
    %242 = vmatpush1.msra.mxu0 %v172
    %243 = vmatprep.subr.mxu0 0.0
    %244 = vmatpush1.msra.mxu0 %v173
    %245 = vmatprep.subr.mxu0 0.0
    %246 = vmatpush1.msra.mxu0 %v174
    %247 = vmatprep.subr.mxu0 0.0
    %248 = vmatpush1.msra.mxu0 %v175
    %249 = vmatprep.subr.mxu0 0.0
    %250 = vmatpush1.msra.mxu0 %v176
    %251 = vmatprep.subr.mxu0 0.0
    %252 = vmatpush1.msra.mxu0 %v189
    %253 = vmatprep.subr.mxu0 0.0
    %254 = vmatpush1.msra.mxu0 0.0
    %255 = vmatprep.mubr.f32.mxu0 %v179
    %256 = vmatmul.mubr.f32.gmra.mrb[0].mxu0 %v136
    %v257 = vpop.f32.mrb[0].mxu0
    %v258 = vadd.f32 %v97, %v257
    %v259 = vpop.f32.mrb[0].mxu0
    %260 = vmatprep.mubr.f32.mxu0 %v182
    %261 = vmatmul.mubr.f32.gmra.mrb[0].mxu0 %v140
    %v262 = vpop.f32.mrb[0].mxu0
    %v263 = vadd.f32 %v97, %v262
    %v264 = vpop.f32.mrb[0].mxu0
    %265 = vmatprep.mubr.f32.mxu0 %v185
    %266 = vmatmul.mubr.f32.gmra.mrb[0].mxu0 %v144
    %v267 = vpop.f32.mrb[0].mxu0
    %v268 = vadd.f32 %v97, %v267
    %v269 = vpop.f32.mrb[0].mxu0
    %270 = vdwg.mxu0
    %v271 = vlog2.pop %v258
    %v272 = vmul.f32 %v271, 0.6931472
    %v273 = vlog2.pop %v263
    %v274 = vmul.f32 %v273, 0.6931472
    %v275 = vlog2.pop %v268
    %v276 = vmul.f32 %v275, 0.6931472
    %277 = vadd.xlane.f32.xlu0 %v272
    %v278 = vpop.xlane.xlu0 %277
    %279 = vadd.xlane.f32.xlu0 %v274
    %v280 = vpop.xlane.xlu0 %279
    %281 = vadd.xlane.f32.xlu0 %v276
    %v282 = vpop.xlane.xlu0 %281
    %v283 = vld [vmem:[%s3] sm:$0xff]
    %v284 = vld [vmem:[%s3 + $0x8] sm:$0xff]
    %v285 = vld [vmem:[%s3 + $0x10] sm:$0x7]
    %v286 = vld [vmem:[%s3 + $0x18] sm:$0x7]
    %vm287 = vcmask 89088
    %v289 = vsel %vm287, %v90, 0
    %v292 = vsel %vm287, %v91, 0
    %v295 = vsel %vm287, %v92, 0
    %vm297 = vcmask 1042432
    %v299 = vsel %vm297, %v285, 0
    %v302 = vsel %vm297, %v286, 0
    %304 = vmatprep.subr.mxu0 %v284
    %305 = vmatpush1.msra.mxu0 %v283
    %306 = vmatprep.subr.mxu0 %v302
    %307 = vmatpush1.msra.mxu0 %v299
    %308 = vmatprep.subr.mxu0 0.0
    %309 = vmatpush1.msra.mxu0 0.0
    %310 = vmatprep.subr.mxu0 0.0
    %311 = vmatpush1.msra.mxu0 0.0
    %312 = vmatprep.subr.mxu0 0.0
    %313 = vmatpush1.msra.mxu0 0.0
    %314 = vmatprep.subr.mxu0 0.0
    %315 = vmatpush1.msra.mxu0 0.0
    %316 = vmatprep.subr.mxu0 0.0
    %317 = vmatpush1.msra.mxu0 0.0
    %318 = vmatprep.subr.mxu0 0.0
    %319 = vmatpush1.msra.mxu0 0.0
    %320 = vmatprep.subr.mxu0 0.0
    %321 = vmatpush1.msra.mxu0 0.0
    %322 = vmatprep.subr.mxu0 0.0
    %323 = vmatpush1.msra.mxu0 0.0
    %324 = vmatprep.subr.mxu0 0.0
    %325 = vmatpush1.msra.mxu0 0.0
    %326 = vmatprep.subr.mxu0 0.0
    %327 = vmatpush1.msra.mxu0 0.0
    %328 = vmatprep.subr.mxu0 0.0
    %329 = vmatpush1.msra.mxu0 0.0
    %330 = vmatprep.subr.mxu0 0.0
    %331 = vmatpush1.msra.mxu0 0.0
    %332 = vmatprep.subr.mxu0 0.0
    %333 = vmatpush1.msra.mxu0 0.0
    %334 = vmatprep.subr.mxu0 0.0
    %335 = vmatpush1.msra.mxu0 0.0
    %336 = vmatprep.subr.mxu0 0.0
    %337 = vmatpush1.msra.mxu0 0.0
    %338 = vmatprep.subr.mxu0 0.0
    %339 = vmatpush1.msra.mxu0 0.0
    %340 = vmatprep.subr.mxu0 0.0
    %341 = vmatpush1.msra.mxu0 0.0
    %342 = vmatprep.subr.mxu0 0.0
    %343 = vmatpush1.msra.mxu0 0.0
    %344 = vmatprep.subr.mxu0 0.0
    %345 = vmatpush1.msra.mxu0 0.0
    %346 = vmatprep.subr.mxu0 0.0
    %347 = vmatpush1.msra.mxu0 0.0
    %348 = vmatprep.subr.mxu0 0.0
    %349 = vmatpush1.msra.mxu0 0.0
    %350 = vmatprep.subr.mxu0 0.0
    %351 = vmatpush1.msra.mxu0 0.0
    %352 = vmatprep.subr.mxu0 0.0
    %353 = vmatpush1.msra.mxu0 0.0
    %354 = vmatprep.subr.mxu0 0.0
    %355 = vmatpush1.msra.mxu0 0.0
    %356 = vmatprep.subr.mxu0 0.0
    %357 = vmatpush1.msra.mxu0 0.0
    %358 = vmatprep.subr.mxu0 0.0
    %359 = vmatpush1.msra.mxu0 0.0
    %360 = vmatprep.subr.mxu0 0.0
    %361 = vmatpush1.msra.mxu0 0.0
    %362 = vmatprep.subr.mxu0 0.0
    %363 = vmatpush1.msra.mxu0 0.0
    %364 = vmatprep.subr.mxu0 0.0
    %365 = vmatpush1.msra.mxu0 0.0
    %366 = vmatprep.subr.mxu0 0.0
    %367 = vmatpush1.msra.mxu0 0.0
    %368 = vmatprep.mubr.f32.mxu0 0.0
    %369 = vmatmul.mubr.f32.gmra.mrb[0].mxu0 %v289
    %v370 = vpop.f32.mrb[0].mxu0
    %v371 = vadd.f32 0.0, %v370
    %v372 = vpop.f32.mrb[0].mxu0
    %v373 = vadd.f32 0.0, %v372
    %374 = vmatprep.mubr.f32.mxu0 0.0
    %375 = vmatmul.mubr.f32.gmra.mrb[0].mxu0 %v292
    %v376 = vpop.f32.mrb[0].mxu0
    %v377 = vadd.f32 0.0, %v376
    %v378 = vpop.f32.mrb[0].mxu0
    %v379 = vadd.f32 0.0, %v378
    %380 = vmatprep.mubr.f32.mxu0 0.0
    %381 = vmatmul.mubr.f32.gmra.mrb[0].mxu0 %v295
    %v382 = vpop.f32.mrb[0].mxu0
    %v383 = vadd.f32 0.0, %v382
    %v384 = vpop.f32.mrb[0].mxu0
    %v385 = vadd.f32 0.0, %v384
    %386 = vdwg.mxu0
    %v388 = vlaneseq
    %v389 = vshrl.u32 %v388, 7
    %v390 = vsub.s32 0, %v389
    %v391 = vrot.slane %v93, %v390
    %v392 = vlaneseq
    %v393 = vshrl.u32 %v392, 7
    %v394 = vsub.s32 1, %v393
    %v395 = vrot.slane %v93, %v394
    %v398 = vsub.f32 %v371, %v391
    %v399 = vsub.f32 %v373, %v395
    %v400 = vsub.f32 %v377, %v391
    %v401 = vsub.f32 %v379, %v395
    %v402 = vsub.f32 %v383, %v391
    %v403 = vsub.f32 %v385, %v395
    %v404 = vand.u32 2147483647, %v398
    %v405 = vand.u32 2147483647, %v399
    %v406 = vand.u32 2147483647, %v400
    %v407 = vand.u32 2147483647, %v401
    %v408 = vand.u32 2147483647, %v402
    %v409 = vand.u32 2147483647, %v403
    %vm410 = vcmp.lt.f32.partialorder %v404, 0.5
    %vm411 = vcmp.lt.f32.partialorder %v405, 0.5
    %vm412 = vcmp.lt.f32.partialorder %v406, 0.5
    %vm413 = vcmp.lt.f32.partialorder %v407, 0.5
    %vm414 = vcmp.lt.f32.partialorder %v408, 0.5
    %vm415 = vcmp.lt.f32.partialorder %v409, 0.5
    %v416 = vsel %vm410, %v84, 0.0
    %v417 = vsel %vm411, %v85, 0.0
    %v418 = vsel %vm412, %v86, 0.0
    %v419 = vsel %vm413, %v87, 0.0
    %v420 = vsel %vm414, %v88, 0.0
    %v421 = vsel %vm415, %v89, 0.0
    %v422 = vsel %vm116, %v417, 0.0
    %v423 = vadd.f32 %v416, %v422
    %424 = vadd.xlane.f32.xlu0 %v423
    %v425 = vpop.xlane.xlu0 %424
    %v426 = vsel %vm116, %v419, 0.0
    %v427 = vadd.f32 %v418, %v426
    %428 = vadd.xlane.f32.xlu0 %v427
    %v429 = vpop.xlane.xlu0 %428
    %v430 = vsel %vm116, %v421, 0.0
    %v431 = vadd.f32 %v420, %v430
    %432 = vadd.xlane.f32.xlu0 %v431
    %v433 = vpop.xlane.xlu0 %432
    %v434 = vmul.f32 %v120, 7.0
    %v435 = vmul.f32 %v124, 7.0
    %v436 = vmul.f32 %v128, 7.0
    %v437 = vadd.f32 %v434, %v278
    %v438 = vadd.f32 %v435, %v280
    %v439 = vadd.f32 %v436, %v282
    %v440 = vsub.f32 %v437, %v425
    %v441 = vsub.f32 %v438, %v429
    %v442 = vsub.f32 %v439, %v433
    %v443 = vsub.f32 %v84, %v90
    %v444 = vsub.f32 %v86, %v91
    %v445 = vsub.f32 %v88, %v92
    %v446 = vand.u32 2147483647, %v443
    %v447 = vand.u32 2147483647, %v444
    %v448 = vand.u32 2147483647, %v445
    %v449 = vmul.f32 %v96, %v446
    %v450 = vmul.f32 %v96, %v447
    %v451 = vmul.f32 %v96, %v448
    %vm452 = vcmask 31744
    %v453 = vsel %vm452, %v449, 0.0
    %454 = vadd.xlane.f32.xlu0 %v453
    %v455 = vpop.xlane.xlu0 %454
    %v456 = vsel %vm452, %v450, 0.0
    %457 = vadd.xlane.f32.xlu0 %v456
    %v458 = vpop.xlane.xlu0 %457
    %v459 = vsel %vm452, %v451, 0.0
    %460 = vadd.xlane.f32.xlu0 %v459
    %v461 = vpop.xlane.xlu0 %460
    %v462 = vadd.f32 %v455, %v440
    %v463 = vadd.f32 %v458, %v441
    %v464 = vadd.f32 %v461, %v442
    %s465 = sadd.s32 0, 0
    %s466 = smul.u32 %s465, 24
    %v467 = vlaneseq
    %v468 = vshrl.u32 %v467, 7
    %v469 = vadd.s32 %v468, 8
    %v470 = vadd.s32 %v468, 16
    %v471 = vstv %s466
    %v472 = vadd.s32 %v471, %v468
    %v473 = vadd.s32 %v471, %v469
    %v474 = vadd.s32 %v471, %v470
    %vm475 = vcmp.lt.s32.totalorder %v472, 20
    %vm476 = vcmp.lt.s32.totalorder %v473, 20
    %vm477 = vcmp.lt.s32.totalorder %v474, 20
    %v478 = vsel %vm475, %v462, 0.0
    %v479 = vsel %vm476, %v463, 0.0
    %v480 = vsel %vm477, %v464, 0.0
    %v481 = vld [vmem:[#allocation2] sm:$0x1]
    %vm482 = vcmask 7168
    %v483 = vsel %vm482, %v478, 0.0
    %v484 = vsel %vm482, %v479, 0.0
    %v485 = vadd.f32 %v483, %v484
    %v486 = vsel %vm482, %v480, 0.0
    %v487 = vadd.f32 %v485, %v486
    %488 = vadd.xlane.f32.xlu0 %v487
    %v489 = vpop.xlane.xlu0 %488
    %v490 = vrot.slane %v489, 4
    %v491 = vadd.f32 %v489, %v490
    %v492 = vrot.slane %v491, 2
    %v493 = vadd.f32 %v491, %v492
    %v494 = vrot.slane %v493, 1
    %v495 = vadd.f32 %v493, %v494
    %s496 = vtos %v495
    %v497 = vstv %s496
    %v498 = vadd.f32 %v481, %v497
    %vm499 = vcmask 0
    %500 = vst.msk [vmem:[#allocation2] sm:$0x1] %vm499, %v498
    // Predicated region
    $region34: #{tpu_custom_call.1} parent=1 // pred_check
      %p501 = pneg %p78
    $region35: #{tpu_custom_call.1} parent=1 // pred_check_branch
      %503 = sbr.rel (%p501) target = $region37
    $region36: #{tpu_custom_call.1} parent=1 // pred_region
      %v504 = vld [vmem:[#allocation2] sm:$0x1]
      %v505 = vmul.f32 %v504, 0.05
      %v507 = vlaneseq
      %v508 = vshrl.u32 %v507, 7
      %v509 = vsub.s32 0, %v508
      %v510 = vrot.slane %v505, %v509
      %511 = vset.pattern.permute.xlu0 0
      %512 = vperm.xlu0 %511, %v510
      %v513 = vpop.permute.xlu0 %512
      %515 = vst [vmem:[#allocation8] sm:$0xff] %v513
    $region37: #{tpu_custom_call.1} parent=1 // pred_fallthru
      _
    // Predicated region
    $region38: #{tpu_custom_call.1} parent=1 // pred_check
      _
    $region39: #{tpu_custom_call.1} parent=1 // pred_check_branch
      %517 = sbr.rel (0) target = $region41
    $region40: #{tpu_custom_call.1} parent=1 // pred_region
      %s519 = ssub.s32 128, 128
      %520 = vsyncadd [#allocation5], %s519
      %s522 = sshll.u32 [#allocation8], 4
      %s523 = int_to_ptr.vmem [resolvable:$true] %s522
      %525 = dma.vmem_to_hbm [thread:$0]  %s523, 128, %s5, [#allocation5]
    $region41: #{tpu_custom_call.1} parent=1 // pred_fallthru
      _
    // Predicated region
    $region42: #{tpu_custom_call.1} parent=1 // pred_check
      _
    $region43: #{tpu_custom_call.1} parent=1 // pred_check_branch
      %527 = sbr.rel (0) target = $region45
    $region44: #{tpu_custom_call.1} parent=1 // pred_region
      %528 = dma.done [#allocation5], 128
    $region45: #{tpu_custom_call.1} parent=1 // pred_fallthru
      _
    %529 = vsyncpa [#allocation4], 1
    %530 = vsyncpa [#allocation7], 1
    %531 = vsyncpa [#allocation5], 1

</llo_original>
